<compile_context>
chip_gen: v5e
topology: v5e:2x2
jax: 0.10.0
libtpu: 0.0.40
codegen_flags: <defaults>
</compile_context>

<pallas_src>
import functools

import jax
import jax.numpy as jnp
from jax.experimental import pallas as pl
from jax.experimental.pallas import tpu as pltpu


def _round_up(x, m):
    return ((x + m - 1) // m) * m


def _conv1d_kernel(x_ref, xh_ref, w_ref, b_ref, o_ref, *, kernel_size,
                   dilation, start, l_tile):
    """One (batch, seq-tile) grid step.

    x_ref : (TL, H)  rows [i*TL, i*TL+TL) of the padded input (compute dtype)
    xh_ref: (TB, H)  rows [(i+1)*TL, (i+1)*TL+TB) -- right-halo source block
    w_ref : (K, H, H) per-tap (H_in, H_out) matmul operands (compute dtype)
    b_ref : (1, H)   f32 bias
    o_ref : (TL, H)  output rows [i*TL, i*TL+TL)
    """
    h_out = o_ref.shape[-1]
    # Window of TL + TB rows: everything any tap of this tile can touch.
    win = jnp.concatenate([x_ref[...], xh_ref[...]], axis=0)
    acc = jnp.zeros((l_tile, h_out), jnp.float32)
    for k in range(kernel_size):          # small static tap loop -> chained MXU accumulate
        off = start + k * dilation        # static Python int -> static slice
        acc += jnp.dot(win[off:off + l_tile, :], w_ref[k],
                       preferred_element_type=jnp.float32)
    o_ref[...] = (acc + b_ref[...]).astype(o_ref.dtype)


def conv1d_forward(x, weight, bias, *, kernel_size, dilation=1,
                   tile_rows=512, compute_dtype=jnp.bfloat16):
    """Forward pass equivalent to the PyTorch Conv1d module.

    Args:
      x:      (B, L, H) input embeddings.
      weight: (H, H, K) nn.Conv1d weight (out_ch, in_ch, K).
      bias:   (H,)      nn.Conv1d bias.
      tile_rows:     target number of output rows per sequence tile.
      compute_dtype: dtype fed to the MXU (None -> keep x.dtype). Accumulation
                     is always f32; the output keeps x.dtype.
    Returns:
      (B, L_out, H) convolution output.
    """
    B, L, H = x.shape
    out_dtype = x.dtype
    if compute_dtype is None:
        compute_dtype = x.dtype

    if kernel_size % 2 == 0:
        padding = kernel_size // 2 * dilation
        shift = True
    else:
        padding = (kernel_size - 1) // 2 * dilation
        shift = False

    start = 1 if shift else 0                       # the [:, 1:] slice for even K
    l_conv = L + 2 * padding - dilation * (kernel_size - 1)
    l_out = l_conv - start
    halo = start + dilation * (kernel_size - 1)     # extra rows a tile reads past TL

    in_b = jnp.dtype(compute_dtype).itemsize
    out_b = jnp.dtype(out_dtype).itemsize

    # Sublane alignment: 8 rows for f32, 16 for packed bf16.
    sub = 8 if in_b >= 4 else 16
    tb = max(sub, _round_up(max(halo, 1), sub))     # halo block rows (TL % TB == 0)
    tl = max(tb, _round_up(min(tile_rows, l_out), tb))

    def vmem_estimate(tl_):
        return (2 * (tl_ + tb) * H * in_b           # double-buffered input blocks
                + 2 * tl_ * H * out_b               # double-buffered output block
                + kernel_size * H * H * in_b        # resident weight block
                + tl_ * H * 4                       # f32 accumulator
                + 4 * H)                            # bias

    budget = 40 * 1024 * 1024                       # leaves headroom in v7x's 64 MiB VMEM
    while vmem_estimate(tl) > budget and tl > tb:
        tl = max(tb, _round_up(tl // 2, tb))

    n_tiles = pl.cdiv(l_out, tl)
    l_total = n_tiles * tl + tb                     # every A/B block stays in-bounds
    ratio = tl // tb

    # glue: dtype cast (bf16 halves HBM traffic and doubles MXU rate), minimal
    # sequence padding, weight reorg to (K, H_in, H_out), bias to (1, H) f32.
    # TODO(synk): the jnp.pad still costs one extra HBM read+write of x; removing
    # it entirely needs in-kernel boundary masking (manual DMA / clamped index_map).
    x_c = x.astype(compute_dtype)
    x_pad = jnp.pad(x_c, ((0, 0), (padding, l_total - L - padding), (0, 0)))
    w_t = jnp.transpose(weight, (2, 1, 0)).astype(compute_dtype)  # (K, H_in, H_out)
    b2 = bias.astype(jnp.float32).reshape(1, H)

    kernel = functools.partial(
        _conv1d_kernel,
        kernel_size=kernel_size,
        dilation=dilation,
        start=start,
        l_tile=tl,
    )

    vmem_limit = int(min(64 * 1024 * 1024,
                         max(32 * 1024 * 1024,
                             2 * vmem_estimate(tl) + (4 << 20))))

    return pl.pallas_call(
        kernel,
        out_shape=jax.ShapeDtypeStruct((B, l_out, H), out_dtype),
        grid_spec=pltpu.PrefetchScalarGridSpec(
            num_scalar_prefetch=0,
            grid=(B, n_tiles),
            in_specs=[
                # main tile rows [i*TL, i*TL+TL)
                pl.BlockSpec((None, tl, H), lambda b, i: (b, i, 0)),
                # right halo rows [(i+1)*TL, (i+1)*TL+TB)
                pl.BlockSpec((None, tb, H), lambda b, i: (b, (i + 1) * ratio, 0)),
                # weights + bias stay resident (constant index map)
                pl.BlockSpec((kernel_size, H, H), lambda b, i: (0, 0, 0)),
                pl.BlockSpec((1, H), lambda b, i: (0, 0)),
            ],
            out_specs=pl.BlockSpec((None, tl, H), lambda b, i: (b, i, 0)),
        ),
        compiler_params=pltpu.CompilerParams(
            dimension_semantics=("parallel", "parallel"),
            vmem_limit_bytes=vmem_limit),
    )(x_pad, x_pad, w_t, b2)


def _reference(x, weight, bias, *, kernel_size, dilation=1):
    """Pure-JAX reference reproducing the PyTorch module semantics."""
    if kernel_size % 2 == 0:
        padding = kernel_size // 2 * dilation
        shift = True
    else:
        padding = (kernel_size - 1) // 2 * dilation
        shift = False
    xt = jnp.transpose(x, (0, 2, 1))  # (B, H, L) like x.transpose(1, 2)
    y = jax.lax.conv_general_dilated(
        xt, weight, window_strides=(1,), padding=[(padding, padding)],
        rhs_dilation=(dilation,),
        dimension_numbers=("NCH", "OIH", "NCH"))
    y = y + bias[None, :, None]
    y = jnp.transpose(y, (0, 2, 1))
    if shift:
        y = y[:, 1:]
    return y


if __name__ == "__main__":
    B, L, H = 2, 40, 128
    key = jax.random.PRNGKey(0)
    kx, kw, kb = jax.random.split(key, 3)
    x = jax.random.normal(kx, (B, L, H), dtype=jnp.float32)

    ok = True

    # bf16 MXU path with a tiny tile (16 rows) to exercise multi-tile pipelining,
    # the halo block, and the ragged last output tile. Reference uses the same
    # bf16-rounded operands so products are exact and only summation order differs.
    for idx, (ksize, dil) in enumerate(((3, 1), (4, 1), (3, 2), (4, 2))):
        kwi, kbi = jax.random.split(jax.random.fold_in(kw, idx), 2)
        scale = 1.0 / (H * ksize) ** 0.5
        weight = jax.random.uniform(kwi, (H, H, ksize), jnp.float32,
                                    minval=-scale, maxval=scale)
        bias = jax.random.uniform(kbi, (H,), jnp.float32,
                                  minval=-scale, maxval=scale)

        out = conv1d_forward(x, weight, bias, kernel_size=ksize, dilation=dil,
                             tile_rows=16, compute_dtype=jnp.bfloat16)
        out = jax.block_until_ready(out)
        ref = _reference(x.astype(jnp.bfloat16).astype(jnp.float32),
                         weight.astype(jnp.bfloat16).astype(jnp.float32),
                         bias, kernel_size=ksize, dilation=dil)
        if out.shape != ref.shape or not bool(
                jnp.allclose(out, ref, atol=2e-3, rtol=2e-3)):
            ok = False

    # Pure f32 path with the default tile size (single tile) -> exact semantics.
    ksize, dil = 3, 1
    kwi, kbi = jax.random.split(jax.random.fold_in(kw, 99), 2)
    scale = 1.0 / (H * ksize) ** 0.5
    weight = jax.random.uniform(kwi, (H, H, ksize), jnp.float32,
                                minval=-scale, maxval=scale)
    bias = jax.random.uniform(kbi, (H,), jnp.float32,
                              minval=-scale, maxval=scale)
    out = conv1d_forward(x, weight, bias, kernel_size=ksize, dilation=dil,
                         compute_dtype=None)
    out = jax.block_until_ready(out)
    ref = _reference(x, weight, bias, kernel_size=ksize, dilation=dil)
    if out.shape != ref.shape or not bool(
            jnp.allclose(out, ref, atol=1e-4, rtol=1e-4)):
        ok = False

    if ok:
        print("KERNEL_OK")
</pallas_src>

<mosaic_0001>
module attributes {stable_mosaic.version = 11 : i64} {
  func.func @_conv1d_kernel(%arg0: i32, %arg1: i32, %arg2: memref<1x16x128xbf16, #tpu.memory_space<vmem>>, %arg3: memref<1x16x128xbf16, #tpu.memory_space<vmem>>, %arg4: memref<3x128x128xbf16, #tpu.memory_space<vmem>>, %arg5: memref<1x128xf32, #tpu.memory_space<vmem>>, %arg6: memref<1x16x128xf32, #tpu.memory_space<vmem>>) attributes {dimension_semantics = [#tpu.dimension_semantics<parallel>, #tpu.dimension_semantics<parallel>], iteration_bounds = array<i64: 2, 3>, scalar_prefetch = 0 : i64, scratch_operands = 0 : i64, tpu.core_type = #tpu.core_type<tc>, window_params = [{transform_indices = @transform_0, window_bounds = array<i64: 1, 16, 128>}, {transform_indices = @transform_1, window_bounds = array<i64: 1, 16, 128>}, {pipeline_mode = #tpu.pipeline_mode<synchronous>, transform_indices = @transform_2, window_bounds = array<i64: 3, 128, 128>}, {pipeline_mode = #tpu.pipeline_mode<synchronous>, transform_indices = @transform_3, window_bounds = array<i64: 1, 128>}, {transform_indices = @transform_4, window_bounds = array<i64: 1, 16, 128>}]} {
    %c0 = arith.constant 0 : index
    %c0_0 = arith.constant 0 : index
    %c0_1 = arith.constant 0 : index
    %0 = vector.load %arg2[%c0, %c0_0, %c0_1] : memref<1x16x128xbf16, #tpu.memory_space<vmem>>, vector<1x16x128xbf16>
    %1 = vector.shape_cast %0 : vector<1x16x128xbf16> to vector<16x128xbf16>
    %c0_2 = arith.constant 0 : index
    %c0_3 = arith.constant 0 : index
    %c0_4 = arith.constant 0 : index
    %2 = vector.load %arg3[%c0_2, %c0_3, %c0_4] : memref<1x16x128xbf16, #tpu.memory_space<vmem>>, vector<1x16x128xbf16>
    %3 = vector.shape_cast %2 : vector<1x16x128xbf16> to vector<16x128xbf16>
    %4 = tpu.concatenate %1, %3 in 0 : vector<16x128xbf16>, vector<16x128xbf16> -> vector<32x128xbf16>
    %cst = arith.constant 0.000000e+00 : f32
    %5 = vector.broadcast %cst : f32 to vector<16x128xf32>
    %6 = vector.extract_strided_slice %4 {offsets = [0, 0], sizes = [16, 128], strides = [1, 1]} : vector<32x128xbf16> to vector<16x128xbf16>
    %c0_5 = arith.constant 0 : index
    %c0_6 = arith.constant 0 : index
    %c0_7 = arith.constant 0 : index
    %7 = vector.load %arg4[%c0_5, %c0_6, %c0_7] : memref<3x128x128xbf16, #tpu.memory_space<vmem>>, vector<1x128x128xbf16>
    %8 = vector.shape_cast %7 : vector<1x128x128xbf16> to vector<128x128xbf16>
    %cst_8 = arith.constant dense<0.000000e+00> : vector<16x128xf32>
    %9 = tpu.matmul %6, %8, %cst_8 {dimension_numbers = #tpu.dot_dimension_numbers<[1], [0], [0], [1], [0, 0, 1, 1], [], []>} : vector<16x128xbf16>, vector<128x128xbf16>, vector<16x128xf32> -> vector<16x128xf32>
    %10 = arith.addf %5, %9 : vector<16x128xf32>
    %11 = vector.extract_strided_slice %4 {offsets = [1, 0], sizes = [16, 128], strides = [1, 1]} : vector<32x128xbf16> to vector<16x128xbf16>
    %c1 = arith.constant 1 : index
    %c0_9 = arith.constant 0 : index
    %c0_10 = arith.constant 0 : index
    %12 = vector.load %arg4[%c1, %c0_9, %c0_10] : memref<3x128x128xbf16, #tpu.memory_space<vmem>>, vector<1x128x128xbf16>
    %13 = vector.shape_cast %12 : vector<1x128x128xbf16> to vector<128x128xbf16>
    %cst_11 = arith.constant dense<0.000000e+00> : vector<16x128xf32>
    %14 = tpu.matmul %11, %13, %cst_11 {dimension_numbers = #tpu.dot_dimension_numbers<[1], [0], [0], [1], [0, 0, 1, 1], [], []>} : vector<16x128xbf16>, vector<128x128xbf16>, vector<16x128xf32> -> vector<16x128xf32>
    %15 = arith.addf %10, %14 : vector<16x128xf32>
    %16 = vector.extract_strided_slice %4 {offsets = [2, 0], sizes = [16, 128], strides = [1, 1]} : vector<32x128xbf16> to vector<16x128xbf16>
    %c2 = arith.constant 2 : index
    %c0_12 = arith.constant 0 : index
    %c0_13 = arith.constant 0 : index
    %17 = vector.load %arg4[%c2, %c0_12, %c0_13] : memref<3x128x128xbf16, #tpu.memory_space<vmem>>, vector<1x128x128xbf16>
    %18 = vector.shape_cast %17 : vector<1x128x128xbf16> to vector<128x128xbf16>
    %cst_14 = arith.constant dense<0.000000e+00> : vector<16x128xf32>
    %19 = tpu.matmul %16, %18, %cst_14 {dimension_numbers = #tpu.dot_dimension_numbers<[1], [0], [0], [1], [0, 0, 1, 1], [], []>} : vector<16x128xbf16>, vector<128x128xbf16>, vector<16x128xf32> -> vector<16x128xf32>
    %20 = arith.addf %15, %19 : vector<16x128xf32>
    %c0_15 = arith.constant 0 : index
    %c0_16 = arith.constant 0 : index
    %21 = vector.load %arg5[%c0_15, %c0_16] : memref<1x128xf32, #tpu.memory_space<vmem>>, vector<1x128xf32>
    %22 = vector.broadcast %21 : vector<1x128xf32> to vector<16x128xf32>
    %23 = arith.addf %20, %22 : vector<16x128xf32>
    %c0_17 = arith.constant 0 : index
    %c0_18 = arith.constant 0 : index
    %c0_19 = arith.constant 0 : index
    %24 = vector.load %arg6[%c0_17, %c0_18, %c0_19] : memref<1x16x128xf32, #tpu.memory_space<vmem>>, vector<1x16x128xf32>
    %25 = vector.shape_cast %24 : vector<1x16x128xf32> to vector<16x128xf32>
    %26 = vector.shape_cast %23 : vector<16x128xf32> to vector<1x16x128xf32>
    tpu.vector_store %arg6[%c0_17, %c0_18, %c0_19], %26 {strides = array<i32>} : memref<1x16x128xf32, #tpu.memory_space<vmem>>, vector<1x16x128xf32>,
    return
  }
  func.func @transform_0(%arg0: i32, %arg1: i32) -> (i32, i32, i32) {
    %c0_i32 = arith.constant 0 : i32
    %c0_i32_0 = arith.constant 0 : i32
    return %arg0, %arg1, %c0_i32 : i32, i32, i32
  }
  func.func @transform_1(%arg0: i32, %arg1: i32) -> (i32, i32, i32) {
    %c1_i32 = arith.constant 1 : i32
    %0 = arith.addi %arg1, %c1_i32 : i32
    %c1_i32_0 = arith.constant 1 : i32
    %1 = arith.muli %0, %c1_i32_0 : i32
    %c0_i32 = arith.constant 0 : i32
    %c0_i32_1 = arith.constant 0 : i32
    return %arg0, %1, %c0_i32 : i32, i32, i32
  }
  func.func @transform_2(%arg0: i32, %arg1: i32) -> (i32, i32, i32) {
    %c0_i32 = arith.constant 0 : i32
    %c0_i32_0 = arith.constant 0 : i32
    %c0_i32_1 = arith.constant 0 : i32
    %c0_i32_2 = arith.constant 0 : i32
    return %c0_i32, %c0_i32_0, %c0_i32_1 : i32, i32, i32
  }
  func.func @transform_3(%arg0: i32, %arg1: i32) -> (i32, i32) {
    %c0_i32 = arith.constant 0 : i32
    %c0_i32_0 = arith.constant 0 : i32
    %c0_i32_1 = arith.constant 0 : i32
    return %c0_i32, %c0_i32_0 : i32, i32
  }
  func.func @transform_4(%arg0: i32, %arg1: i32) -> (i32, i32, i32) {
    %c0_i32 = arith.constant 0 : i32
    %c0_i32_0 = arith.constant 0 : i32
    return %arg0, %arg1, %c0_i32 : i32, i32, i32
  }
}

</mosaic_0001>

<llo_original>
// kernel: tpu_custom_call.1
$region0: #{tpu_custom_call.1}
  #allocation0 [shape = 'u32[]', space=smem, size = 0x4, offset = 0x4, fixed_abs, tag = 'smem constant byte address 0x4 - core index']
  #allocation1 [shape = 'u32[72,128]{1,0:T(1,128)}', space=vmem, size = 0x9000, scoped, tag = 'internal scratch']
  %s0 = inlined_call_operand.hbm [shape: bf16[2,64,128], index: 0, kind: input, shape index: {}]
  %s1 = inlined_call_operand.hbm [shape: bf16[2,64,128], index: 1, kind: input, shape index: {}]
  %s2 = inlined_call_operand.hbm [shape: bf16[3,128,128], index: 2, kind: input, shape index: {}]
  %s3 = inlined_call_operand.vmem [shape: f32[1,128], index: 3, kind: input, shape index: {}]
  %s4 = inlined_call_operand.hbm [shape: f32[2,40,128], index: 4, kind: output, shape index: {}]
  %s5 = sld [smem:[#allocation0]]
  $region61: #{tpu_custom_call.1} parent=0
    _
  %s7 = ssub.s32 1, %s5
  %s8 = scalar_select 0, %s7, %s5
  $region1: #{tpu_custom_call.1} parent=0
    #allocation2 [shape = 'u8[8192]{0}', space=vmem, size = 0x2000, scoped, tag = 'input window, operand 0']
    #allocation3 [shape = 's32[2]{0}', space=sflag, size = 0x8, scoped, tag = 'scoped memory for tpu_custom_call.1']
    #allocation4 [shape = 's32[2]{0}', space=sflag, size = 0x8, scoped, tag = 'scoped memory for tpu_custom_call.1']
    #allocation5 [shape = 'u8[8192]{0}', space=vmem, size = 0x2000, scoped, tag = 'input window, operand 1']
    #allocation6 [shape = 's32[2]{0}', space=sflag, size = 0x8, scoped, tag = 'scoped memory for tpu_custom_call.1']
    #allocation7 [shape = 'u8[98304]{0}', space=vmem, size = 0x18000, scoped, tag = 'input window, operand 2, single buffered']
    #allocation8 [shape = 'u8[16384]{0}', space=vmem, size = 0x4000, scoped, tag = 'output window, operand 0']
    %9 = vsyncpa [#allocation3], 0
    %s10 = scalar_lea.sflag [#allocation3], 1
    %11 = vsyncpa %s10, 0
    %12 = vsyncpa [#allocation6], 0
    %s13 = scalar_lea.sflag [#allocation6], 1
    %14 = vsyncpa %s13, 0
    %15 = vsyncpa [#allocation4], 0
    %s16 = scalar_lea.sflag [#allocation4], 1
    %17 = vsyncpa %s16, 0
    loop: start=0, step=1, limit=8
    $region2: #{tpu_custom_call.1} parent=1 // loop_pre_header
      _
    $region3: #{tpu_custom_call.1} parent=1 // loop_header
      %s19 = sphi 0, %s23
      %p20 = scmp.ge.s32.totalorder %s19, 8
      %s26 = sphi 0, %s38
      %s27 = sphi 0, %s34
      %s28 = sphi 0, %s26
      %s29 = sphi 0, %s27
      %s30 = sphi 0, %s28
      %s31 = sphi 0, %s29
      %s43 = sphi 0, %s45
      %s46 = sphi 0, %s43
      %s47 = sphi 0, %s46
      %s63 = sphi 0, %s47
      %s73 = sphi 0, %s75
      %s76 = sphi 0, %s73
      %s77 = sphi 0, %s76
      %s93 = sphi 0, %s77
      %s97 = sphi 0, %s97
      %s99 = sphi 0, %s97
      %s100 = sphi 0, %s99
      %s114 = sphi 0, %s100
      %s118 = sphi 0, %s118
      %s120 = sphi 0, %s118
      %s121 = sphi 0, %s120
      %s135 = sphi 0, %s121
      %s143 = sphi 0, %s145
      %s146 = sphi 0, %s143
      %s147 = sphi 0, %s146
      %s163 = sphi 0, %s147
    $region4: #{tpu_custom_call.1} parent=1 // loop_header_branch
      %22 = sbr.rel (%p20) target = $region8
    $region5: #{tpu_custom_call.1} parent=1 // loop_body
      %s24 = ssub.s32 %s19, 1
      %s25 = ssub.s32 %s19, 2
      %s32 = sadd.s32 1, %s27
      %p33 = scmp.ge.s32.totalorder %s32, 3
      %s34 = scalar_select %p33, 0, %s32
      %s35 = sadd.s32 1, %s26
      %s36 = scalar_select %p33, %s35, %s26
      %p37 = scmp.ge.s32.totalorder %s36, 2
      %s38 = scalar_select %p37, 0, %s36
      %s39 = ssub.s32 %s26, %s38
      %s40 = ssub.s32 %s27, %s34
      %s41 = sor.u32 %s39, %s40
      %p42 = scmp.eq.s32.totalorder %s41, 0
      %s44 = sadd.s32 %s43, 1
      %s45 = scalar_select %p42, %s43, %s44
      %p48 = pneg %p42
      %p49 = scmp.eq.s32.totalorder %s19, 5
      %p50 = por %p48, %p49
      %p51 = scmp.ne.s32.totalorder %s43, %s46
      %p52 = scmp.eq.s32.totalorder %s19, 0
      %p53 = por %p51, %p52
      %p54 = scmp.ne.s32.totalorder %s43, %s46
      %p55 = scmp.eq.s32.totalorder %s24, 5
      %p56 = por %p54, %p55
      %p57 = scmp.ne.s32.totalorder %s46, %s47
      %p58 = scmp.eq.s32.totalorder %s24, 0
      %p59 = por %p57, %p58
      %p60 = scmp.ne.s32.totalorder %s46, %s47
      %p61 = scmp.eq.s32.totalorder %s25, 5
      %p62 = por %p60, %p61
      %p64 = scmp.ne.s32.totalorder %s47, %s63
      %p65 = scmp.eq.s32.totalorder %s25, 0
      %p66 = por %p64, %p65
      %s67 = sadd.s32 %s27, 1
      %s68 = sadd.s32 %s34, 1
      %s69 = ssub.s32 %s26, %s38
      %s70 = ssub.s32 %s67, %s68
      %s71 = sor.u32 %s69, %s70
      %p72 = scmp.eq.s32.totalorder %s71, 0
      %s74 = sadd.s32 %s73, 1
      %s75 = scalar_select %p72, %s73, %s74
      %p78 = pneg %p72
      %p79 = scmp.eq.s32.totalorder %s19, 5
      %p80 = por %p78, %p79
      %p81 = scmp.ne.s32.totalorder %s73, %s76
      %p82 = scmp.eq.s32.totalorder %s19, 0
      %p83 = por %p81, %p82
      %p84 = scmp.ne.s32.totalorder %s73, %s76
      %p85 = scmp.eq.s32.totalorder %s24, 5
      %p86 = por %p84, %p85
      %p87 = scmp.ne.s32.totalorder %s76, %s77
      %p88 = scmp.eq.s32.totalorder %s24, 0
      %p89 = por %p87, %p88
      %p90 = scmp.ne.s32.totalorder %s76, %s77
      %p91 = scmp.eq.s32.totalorder %s25, 5
      %p92 = por %p90, %p91
      %p94 = scmp.ne.s32.totalorder %s77, %s93
      %p95 = scmp.eq.s32.totalorder %s25, 0
      %p96 = por %p94, %p95
      %s98 = sadd.s32 %s97, 1
      %p101 = scmp.eq.s32.totalorder %s19, 5
      %p102 = scmp.ne.s32.totalorder %s97, %s99
      %p103 = scmp.eq.s32.totalorder %s19, 0
      %p104 = por %p102, %p103
      %p105 = scmp.ne.s32.totalorder %s97, %s99
      %p106 = scmp.eq.s32.totalorder %s24, 5
      %p107 = por %p105, %p106
      %p108 = scmp.ne.s32.totalorder %s99, %s100
      %p109 = scmp.eq.s32.totalorder %s24, 0
      %p110 = por %p108, %p109
      %p111 = scmp.ne.s32.totalorder %s99, %s100
      %p112 = scmp.eq.s32.totalorder %s25, 5
      %p113 = por %p111, %p112
      %p115 = scmp.ne.s32.totalorder %s100, %s114
      %p116 = scmp.eq.s32.totalorder %s25, 0
      %p117 = por %p115, %p116
      %s119 = sadd.s32 %s118, 1
      %p122 = scmp.eq.s32.totalorder %s19, 5
      %p123 = scmp.ne.s32.totalorder %s118, %s120
      %p124 = scmp.eq.s32.totalorder %s19, 0
      %p125 = por %p123, %p124
      %p126 = scmp.ne.s32.totalorder %s118, %s120
      %p127 = scmp.eq.s32.totalorder %s24, 5
      %p128 = por %p126, %p127
      %p129 = scmp.ne.s32.totalorder %s120, %s121
      %p130 = scmp.eq.s32.totalorder %s24, 0
      %p131 = por %p129, %p130
      %p132 = scmp.ne.s32.totalorder %s120, %s121
      %p133 = scmp.eq.s32.totalorder %s25, 5
      %p134 = por %p132, %p133
      %p136 = scmp.ne.s32.totalorder %s121, %s135
      %p137 = scmp.eq.s32.totalorder %s25, 0
      %p138 = por %p136, %p137
      %s139 = ssub.s32 %s26, %s38
      %s140 = ssub.s32 %s27, %s34
      %s141 = sor.u32 %s139, %s140
      %p142 = scmp.eq.s32.totalorder %s141, 0
      %s144 = sadd.s32 %s143, 1
      %s145 = scalar_select %p142, %s143, %s144
      %p148 = pneg %p142
      %p149 = scmp.eq.s32.totalorder %s19, 5
      %p150 = por %p148, %p149
      %p151 = scmp.ne.s32.totalorder %s143, %s146
      %p152 = scmp.eq.s32.totalorder %s19, 0
      %p153 = por %p151, %p152
      %p154 = scmp.ne.s32.totalorder %s143, %s146
      %p155 = scmp.eq.s32.totalorder %s24, 5
      %p156 = por %p154, %p155
      %p157 = scmp.ne.s32.totalorder %s146, %s147
      %p158 = scmp.eq.s32.totalorder %s24, 0
      %p159 = por %p157, %p158
      %p160 = scmp.ne.s32.totalorder %s146, %s147
      %p161 = scmp.eq.s32.totalorder %s25, 5
      %p162 = por %p160, %p161
      %p164 = scmp.ne.s32.totalorder %s147, %s163
      %p165 = scmp.eq.s32.totalorder %s25, 0
      %p166 = por %p164, %p165
      %p167 = scmp.le.s32.totalorder 1, %s19
      %p168 = scmp.lt.s32.totalorder %s19, 7
      %p169 = pnand %p167, %p168
      %p170 = pneg %p169
      // Predicated region
      $region9: #{tpu_custom_call.1} parent=5 // pred_check
        _
      $region10: #{tpu_custom_call.1} parent=5 // pred_check_branch
        %172 = sbr.rel (%p169) target = $region12
      $region11: #{tpu_custom_call.1} parent=5 // pred_region
        %s173 = ssub.s32 %s19, 1
        // Predicated region
        $region13: #{tpu_custom_call.1} parent=11 // pred_check
          %p174 = pneg %p110
        $region14: #{tpu_custom_call.1} parent=11 // pred_check_branch
          %176 = sbr.rel (%p174) target = $region16
        $region15: #{tpu_custom_call.1} parent=11 // pred_region
          %178 = vsyncadd [#allocation6], 0
          %s179 = sshll.u32 %s2, 4
          %s180 = int_to_ptr.hbm [resolvable:$true] %s179
          %s181 = sshll.u32 [#allocation7], 4
          %s182 = int_to_ptr.vmem [resolvable:$true] %s181
          %187 = dma.hbm_to_vmem [thread:$0]  %s180, 3072, %s182, [#allocation6], 64, 64, 4
        $region16: #{tpu_custom_call.1} parent=11 // pred_fallthru
          _
        // Predicated region
        $region17: #{tpu_custom_call.1} parent=11 // pred_check
          %p188 = pneg %p131
        $region18: #{tpu_custom_call.1} parent=11 // pred_check_branch
          %190 = sbr.rel (%p188) target = $region20
        $region19: #{tpu_custom_call.1} parent=11 // pred_region
          _
        $region20: #{tpu_custom_call.1} parent=11 // pred_fallthru
          _
      $region12: #{tpu_custom_call.1} parent=5 // pred_fallthru
        _
      %p191 = scmp.lt.s32.totalorder %s19, 6
      // Predicated region
      $region21: #{tpu_custom_call.1} parent=5 // pred_check
        %p192 = pneg %p191
      $region22: #{tpu_custom_call.1} parent=5 // pred_check_branch
        %194 = sbr.rel (%p192) target = $region24
      $region23: #{tpu_custom_call.1} parent=5 // pred_region
        // Predicated region
        $region25: #{tpu_custom_call.1} parent=23 // pred_check
          %p195 = pneg %p53
        $region26: #{tpu_custom_call.1} parent=23 // pred_check_branch
          %197 = sbr.rel (%p195) target = $region28
        $region27: #{tpu_custom_call.1} parent=23 // pred_region
          %s198 = sand.u32 %s43, 1
          %s199 = scalar_lea.sflag [#allocation3], %s198
          %s200 = sand.u32 %s43, 1
          %s201 = smul.addr %s200, 8
          %s202 = scalar_lea.vmem [#allocation2], %s201
          %s203 = smul.u32 2, %s27
          %205 = vsyncadd %s199, 0
          %s206 = smul.addr %s26, 8
          %s207 = sadd.s32 %s203, %s206
          %s208 = smul.addr %s207, 4
          %s209 = scalar_lea.hbm %s0, %s208
          %s210 = sshll.u32 %s209, 4
          %s211 = int_to_ptr.hbm [resolvable:$true] %s210
          %s212 = sshll.u32 %s202, 4
          %s213 = int_to_ptr.vmem [resolvable:$true] %s212
          %218 = dma.hbm_to_vmem [thread:$0]  %s211, 128, %s213, %s199, 64, 64, 4
        $region28: #{tpu_custom_call.1} parent=23 // pred_fallthru
          _
        // Predicated region
        $region29: #{tpu_custom_call.1} parent=23 // pred_check
          %p219 = pneg %p83
        $region30: #{tpu_custom_call.1} parent=23 // pred_check_branch
          %221 = sbr.rel (%p219) target = $region32
        $region31: #{tpu_custom_call.1} parent=23 // pred_region
          %s222 = sand.u32 %s19, 1
          %s223 = scalar_lea.sflag [#allocation6], %s222
          %s224 = sand.u32 %s73, 1
          %s225 = smul.addr %s224, 8
          %s226 = scalar_lea.vmem [#allocation5], %s225
          %s227 = sadd.s32 %s27, 1
          %s228 = smul.u32 2, %s227
          %230 = vsyncadd %s223, 0
          %s231 = smul.addr %s26, 8
          %s232 = sadd.s32 %s228, %s231
          %s233 = smul.addr %s232, 4
          %s234 = scalar_lea.hbm %s1, %s233
          %s235 = sshll.u32 %s234, 4
          %s236 = int_to_ptr.hbm [resolvable:$true] %s235
          %s237 = sshll.u32 %s226, 4
          %s238 = int_to_ptr.vmem [resolvable:$true] %s237
          %243 = dma.hbm_to_vmem [thread:$0]  %s236, 128, %s238, %s223, 64, 64, 4
        $region32: #{tpu_custom_call.1} parent=23 // pred_fallthru
          _
      $region24: #{tpu_custom_call.1} parent=5 // pred_fallthru
        _
      %p244 = scmp.le.s32.totalorder 1, %s19
      %p245 = scmp.lt.s32.totalorder %s19, 7
      %p246 = pnand %p244, %p245
      %p247 = pneg %p246
      // Predicated region
      $region33: #{tpu_custom_call.1} parent=5 // pred_check
        _
      $region34: #{tpu_custom_call.1} parent=5 // pred_check_branch
        %249 = sbr.rel (%p246) target = $region36
      $region35: #{tpu_custom_call.1} parent=5 // pred_region
        %s250 = ssub.s32 %s19, 1
        %s251 = sand.u32 %s46, 1
        %s252 = scalar_lea.sflag [#allocation3], %s251
        %s253 = sand.u32 %s46, 1
        %s254 = smul.addr %s253, 8
        %s255 = scalar_lea.vmem [#allocation2], %s254
        // Predicated region
        $region37: #{tpu_custom_call.1} parent=35 // pred_check
          %p256 = pneg %p59
        $region38: #{tpu_custom_call.1} parent=35 // pred_check_branch
          %258 = sbr.rel (%p256) target = $region40
        $region39: #{tpu_custom_call.1} parent=35 // pred_region
          %260 = dma.done %s252, 128
        $region40: #{tpu_custom_call.1} parent=35 // pred_fallthru
          _
        %s261 = sand.u32 %s24, 1
        %s262 = scalar_lea.sflag [#allocation6], %s261
        %s263 = sand.u32 %s76, 1
        %s264 = smul.addr %s263, 8
        %s265 = scalar_lea.vmem [#allocation5], %s264
        // Predicated region
        $region41: #{tpu_custom_call.1} parent=35 // pred_check
          %p266 = pneg %p89
        $region42: #{tpu_custom_call.1} parent=35 // pred_check_branch
          %268 = sbr.rel (%p266) target = $region44
        $region43: #{tpu_custom_call.1} parent=35 // pred_region
          %270 = dma.done %s262, 128
        $region44: #{tpu_custom_call.1} parent=35 // pred_fallthru
          _
        // Predicated region
        $region45: #{tpu_custom_call.1} parent=35 // pred_check
          %p271 = pneg %p110
        $region46: #{tpu_custom_call.1} parent=35 // pred_check_branch
          %273 = sbr.rel (%p271) target = $region48
        $region47: #{tpu_custom_call.1} parent=35 // pred_region
          %275 = dma.done [#allocation6], 3072
        $region48: #{tpu_custom_call.1} parent=35 // pred_fallthru
          _
        %s276 = sand.u32 %s46, 1
        %s277 = scalar_lea.sflag [#allocation3], %s276
        %s278 = sand.u32 %s46, 1
        %s279 = smul.addr %s278, 8
        %s280 = scalar_lea.vmem [#allocation2], %s279
        %p281 = pneg %p59
        %p282 = pneg %p56
        %s283 = sand.u32 %s24, 1
        %s284 = scalar_lea.sflag [#allocation6], %s283
        %s285 = sand.u32 %s76, 1
        %s286 = smul.addr %s285, 8
        %s287 = scalar_lea.vmem [#allocation5], %s286
        %p288 = pneg %p89
        %p289 = pneg %p86
        %p290 = pneg %p110
        %p291 = pneg %p107
        %p292 = pneg %p131
        %p293 = pneg %p128
        %p294 = pneg %p159
        %p295 = pneg %p156
        %s296 = sand.u32 %s146, 1
        %s297 = scalar_lea.sflag [#allocation4], %s296
        %s298 = sand.u32 %s146, 1
        %s299 = smul.addr %s298, 16
        %s300 = scalar_lea.vmem [#allocation8], %s299
        %s301 = smul.u32 2, %s29
        %s302 = sadd.s32 %s29, 1
        %s303 = smul.u32 2, %s302
        %s304 = smul.u32 2, %s29
        %s305 = ssub.s32 5, %s304
        %p306 = scmp.lt.s32.totalorder %s305, 2
        %s307 = scalar_select %p306, %s305, 2
        %s308 = smul.u32 8, %s307
        %v309 = vld [vmem:[%s255] sm:$0xf]
        %v310 = vld [vmem:[%s255 + $0x4] sm:$0xf]
        %v311 = vld [vmem:[%s265] sm:$0xf]
        %v312 = vld [vmem:[%s265 + $0x4] sm:$0xf]
        %v315 = vunpack.c.l.b16 %v309
        %v316 = vunpack.c.l.b16 %v310
        %v317 = vpack.c.b16 %v316, %v315
        %v321 = vunpack.c.l.b16 %v311
        %v322 = vunpack.c.l.b16 %v312
        %v323 = vpack.c.b16 %v322, %v321
        %v324 = vld [vmem:[#allocation7] sm:$0xf]
        %v325 = vld [vmem:[#allocation7 + $0x4] sm:$0xf]
        %v326 = vld [vmem:[#allocation7 + $0x8] sm:$0xf]
        %v327 = vld [vmem:[#allocation7 + $0xc] sm:$0xf]
        %v328 = vld [vmem:[#allocation7 + $0x10] sm:$0xf]
        %v329 = vld [vmem:[#allocation7 + $0x14] sm:$0xf]
        %v330 = vld [vmem:[#allocation7 + $0x18] sm:$0xf]
        %v331 = vld [vmem:[#allocation7 + $0x1c] sm:$0xf]
        %v332 = vld [vmem:[#allocation7 + $0x20] sm:$0xf]
        %v333 = vld [vmem:[#allocation7 + $0x24] sm:$0xf]
        %v334 = vld [vmem:[#allocation7 + $0x28] sm:$0xf]
        %v335 = vld [vmem:[#allocation7 + $0x2c] sm:$0xf]
        %v336 = vld [vmem:[#allocation7 + $0x30] sm:$0xf]
        %v337 = vld [vmem:[#allocation7 + $0x34] sm:$0xf]
        %v338 = vld [vmem:[#allocation7 + $0x38] sm:$0xf]
        %v339 = vld [vmem:[#allocation7 + $0x3c] sm:$0xf]
        %s340 = scalar_lea.vmem [#allocation7], 64
        %v341 = vld [vmem:[%s340] sm:$0xf]
        %v342 = vld [vmem:[%s340 + $0x4] sm:$0xf]
        %v343 = vld [vmem:[%s340 + $0x8] sm:$0xf]
        %v344 = vld [vmem:[%s340 + $0xc] sm:$0xf]
        %v345 = vld [vmem:[%s340 + $0x10] sm:$0xf]
        %v346 = vld [vmem:[%s340 + $0x14] sm:$0xf]
        %v347 = vld [vmem:[%s340 + $0x18] sm:$0xf]
        %v348 = vld [vmem:[%s340 + $0x1c] sm:$0xf]
        %v349 = vld [vmem:[%s340 + $0x20] sm:$0xf]
        %v350 = vld [vmem:[%s340 + $0x24] sm:$0xf]
        %v351 = vld [vmem:[%s340 + $0x28] sm:$0xf]
        %v352 = vld [vmem:[%s340 + $0x2c] sm:$0xf]
        %v353 = vld [vmem:[%s340 + $0x30] sm:$0xf]
        %v354 = vld [vmem:[%s340 + $0x34] sm:$0xf]
        %v355 = vld [vmem:[%s340 + $0x38] sm:$0xf]
        %v356 = vld [vmem:[%s340 + $0x3c] sm:$0xf]
        %vm357 = vsmask.f32 7424
        %v359 = vshrl.u32 %v317, 16
        %v361 = vshll.u32 %v317, 16
        %v363 = vrot.slane %v361, 1
        %v364 = vor.u32 %v359, %v363
        %v366 = vshll.u32 %v323, 16
        %v368 = vrot.slane %v366, 1
        %v369 = vsel %vm357, %v364, %v368
        %v387 = vunpack.c.l.b16 %v341
        %v388 = vunpack.c.l.b16 %v342
        %v389 = vunpack.c.l.b16 %v343
        %v390 = vunpack.c.l.b16 %v344
        %v391 = vunpack.c.l.b16 %v345
        %v392 = vunpack.c.l.b16 %v346
        %v393 = vunpack.c.l.b16 %v347
        %v394 = vunpack.c.l.b16 %v348
        %v395 = vunpack.c.l.b16 %v349
        %v396 = vunpack.c.l.b16 %v350
        %v397 = vunpack.c.l.b16 %v351
        %v398 = vunpack.c.l.b16 %v352
        %v399 = vunpack.c.l.b16 %v353
        %v400 = vunpack.c.l.b16 %v354
        %v401 = vunpack.c.l.b16 %v355
        %v402 = vunpack.c.l.b16 %v356
        %v403 = vpack.c.b16 %v388, %v387
        %v404 = vpack.c.b16 %v390, %v389
        %v405 = vpack.c.b16 %v392, %v391
        %v406 = vpack.c.b16 %v394, %v393
        %v407 = vpack.c.b16 %v396, %v395
        %v408 = vpack.c.b16 %v398, %v397
        %v409 = vpack.c.b16 %v400, %v399
        %v410 = vpack.c.b16 %v402, %v401
        %419 = vmatpush.bf16.msra.mxu0 %v410
        %420 = vmatpush.bf16.msra.mxu0 %v409
        %421 = vmatpush.bf16.msra.mxu0 %v408
        %422 = vmatpush.bf16.msra.mxu0 %v407
        %423 = vmatpush.bf16.msra.mxu0 %v406
        %424 = vmatpush.bf16.msra.mxu0 %v405
        %425 = vmatpush.bf16.msra.mxu0 %v404
        %426 = vmatpush.bf16.msra.mxu0 %v403
        %427 = vmatmul.bf16.gmra.mxu0 %v369
        %v428 = vpop.f32.mrf.mxu0
        %v429 = vadd.f32 0.0, %v428
        %v430 = vpop.f32.mrf.mxu0
        %v431 = vadd.f32 0.0, %v430
        %432 = vdwg.mxu0
        %v449 = vunpack.c.l.b16 %v324
        %v450 = vunpack.c.l.b16 %v325
        %v451 = vunpack.c.l.b16 %v326
        %v452 = vunpack.c.l.b16 %v327
        %v453 = vunpack.c.l.b16 %v328
        %v454 = vunpack.c.l.b16 %v329
        %v455 = vunpack.c.l.b16 %v330
        %v456 = vunpack.c.l.b16 %v331
        %v457 = vunpack.c.l.b16 %v332
        %v458 = vunpack.c.l.b16 %v333
        %v459 = vunpack.c.l.b16 %v334
        %v460 = vunpack.c.l.b16 %v335
        %v461 = vunpack.c.l.b16 %v336
        %v462 = vunpack.c.l.b16 %v337
        %v463 = vunpack.c.l.b16 %v338
        %v464 = vunpack.c.l.b16 %v339
        %v465 = vpack.c.b16 %v450, %v449
        %v466 = vpack.c.b16 %v452, %v451
        %v467 = vpack.c.b16 %v454, %v453
        %v468 = vpack.c.b16 %v456, %v455
        %v469 = vpack.c.b16 %v458, %v457
        %v470 = vpack.c.b16 %v460, %v459
        %v471 = vpack.c.b16 %v462, %v461
        %v472 = vpack.c.b16 %v464, %v463
        %481 = vmatpush.bf16.msra.mxu0 %v472
        %482 = vmatpush.bf16.msra.mxu0 %v471
        %483 = vmatpush.bf16.msra.mxu0 %v470
        %484 = vmatpush.bf16.msra.mxu0 %v469
        %485 = vmatpush.bf16.msra.mxu0 %v468
        %486 = vmatpush.bf16.msra.mxu0 %v467
        %487 = vmatpush.bf16.msra.mxu0 %v466
        %488 = vmatpush.bf16.msra.mxu0 %v465
        %489 = vmatmul.bf16.gmra.mxu0 %v317
        %v490 = vpop.f32.mrf.mxu0
        %v491 = vadd.f32 %v429, %v490
        %v492 = vpop.f32.mrf.mxu0
        %v493 = vadd.f32 %v431, %v492
        %494 = vdwg.mxu0
        %s495 = scalar_lea.vmem [#allocation7], 128
        %v496 = vld [vmem:[%s495] sm:$0xf]
        %v497 = vld [vmem:[%s495 + $0x4] sm:$0xf]
        %v498 = vld [vmem:[%s495 + $0x8] sm:$0xf]
        %v499 = vld [vmem:[%s495 + $0xc] sm:$0xf]
        %v500 = vld [vmem:[%s495 + $0x10] sm:$0xf]
        %v501 = vld [vmem:[%s495 + $0x14] sm:$0xf]
        %v502 = vld [vmem:[%s495 + $0x18] sm:$0xf]
        %v503 = vld [vmem:[%s495 + $0x1c] sm:$0xf]
        %v504 = vld [vmem:[%s495 + $0x20] sm:$0xf]
        %v505 = vld [vmem:[%s495 + $0x24] sm:$0xf]
        %v506 = vld [vmem:[%s495 + $0x28] sm:$0xf]
        %v507 = vld [vmem:[%s495 + $0x2c] sm:$0xf]
        %v508 = vld [vmem:[%s495 + $0x30] sm:$0xf]
        %v509 = vld [vmem:[%s495 + $0x34] sm:$0xf]
        %v510 = vld [vmem:[%s495 + $0x38] sm:$0xf]
        %v511 = vld [vmem:[%s495 + $0x3c] sm:$0xf]
        %vm512 = vcmask 1046528
        %v513 = vrot.slane %v317, 1
        %v514 = vrot.slane %v323, 1
        %v515 = vsel %vm512, %v513, %v514
        %v533 = vunpack.c.l.b16 %v496
        %v534 = vunpack.c.l.b16 %v497
        %v535 = vunpack.c.l.b16 %v498
        %v536 = vunpack.c.l.b16 %v499
        %v537 = vunpack.c.l.b16 %v500
        %v538 = vunpack.c.l.b16 %v501
        %v539 = vunpack.c.l.b16 %v502
        %v540 = vunpack.c.l.b16 %v503
        %v541 = vunpack.c.l.b16 %v504
        %v542 = vunpack.c.l.b16 %v505
        %v543 = vunpack.c.l.b16 %v506
        %v544 = vunpack.c.l.b16 %v507
        %v545 = vunpack.c.l.b16 %v508
        %v546 = vunpack.c.l.b16 %v509
        %v547 = vunpack.c.l.b16 %v510
        %v548 = vunpack.c.l.b16 %v511
        %v549 = vpack.c.b16 %v534, %v533
        %v550 = vpack.c.b16 %v536, %v535
        %v551 = vpack.c.b16 %v538, %v537
        %v552 = vpack.c.b16 %v540, %v539
        %v553 = vpack.c.b16 %v542, %v541
        %v554 = vpack.c.b16 %v544, %v543
        %v555 = vpack.c.b16 %v546, %v545
        %v556 = vpack.c.b16 %v548, %v547
        %565 = vmatpush.bf16.msra.mxu0 %v556
        %566 = vmatpush.bf16.msra.mxu0 %v555
        %567 = vmatpush.bf16.msra.mxu0 %v554
        %568 = vmatpush.bf16.msra.mxu0 %v553
        %569 = vmatpush.bf16.msra.mxu0 %v552
        %570 = vmatpush.bf16.msra.mxu0 %v551
        %571 = vmatpush.bf16.msra.mxu0 %v550
        %572 = vmatpush.bf16.msra.mxu0 %v549
        %573 = vmatmul.bf16.gmra.mxu0 %v515
        %v574 = vpop.f32.mrf.mxu0
        %v575 = vadd.f32 0.0, %v574
        %v576 = vpop.f32.mrf.mxu0
        %v577 = vadd.f32 0.0, %v576
        %578 = vdwg.mxu0
        %v579 = vadd.f32 %v491, %v575
        %v580 = vadd.f32 %v493, %v577
        %v581 = vld [vmem:[%s3] sm:$0x1]
        %v583 = vperm.slane %v581, 0
        %v585 = vadd.f32 %v579, %v583
        %v586 = vadd.f32 %v580, %v583
        %587 = vst [vmem:[%s300] sm:$0xff] %v585
        %588 = vst [vmem:[%s300 + $0x8] sm:$0xff] %v586
        %s589 = sand.u32 %s146, 1
        %s590 = scalar_lea.sflag [#allocation4], %s589
        %s591 = sand.u32 %s146, 1
        %s592 = smul.addr %s591, 16
        %s593 = scalar_lea.vmem [#allocation8], %s592
        // Predicated region
        $region49: #{tpu_custom_call.1} parent=35 // pred_check
          %p594 = pneg %p156
        $region50: #{tpu_custom_call.1} parent=35 // pred_check_branch
          %596 = sbr.rel (%p594) target = $region52
        $region51: #{tpu_custom_call.1} parent=35 // pred_region
          %s597 = smul.u32 2, %s29
          %s598 = ssub.s32 5, %s597
          %p599 = scmp.lt.s32.totalorder %s598, 2
          %s600 = scalar_select %p599, %s598, 2
          %s601 = smul.u32 8, %s600
          %s602 = ssub.s32 16, %s601
          %s603 = sshll.u32 %s602, 4
          %604 = vsyncadd %s590, %s603
          %p605 = scmp.ne.s32.totalorder 0, %s601
          %s606 = smul.addr %s28, 5
          %s607 = sadd.s32 %s597, %s606
          %s608 = smul.addr %s607, 8
          %s609 = scalar_lea.hbm %s4, %s608
          %s610 = smul.u32 8, %s600
          %s611 = sshll.u32 %s593, 4
          %s612 = int_to_ptr.vmem [resolvable:$true] %s611
          %s613 = sshll.u32 %s609, 4
          %s614 = int_to_ptr.hbm [resolvable:$true] %s613
          %s615 = sshll.u32 %s610, 4
          %619 = dma.vmem_to_hbm [thread:$0]  (%p605), %s612, %s615, %s614, %s590, 128, 128, 8
        $region52: #{tpu_custom_call.1} parent=35 // pred_fallthru
          _
      $region36: #{tpu_custom_call.1} parent=5 // pred_fallthru
        _
      %p620 = scmp.le.s32.totalorder 2, %s19
      // Predicated region
      $region53: #{tpu_custom_call.1} parent=5 // pred_check
        %p621 = pneg %p620
      $region54: #{tpu_custom_call.1} parent=5 // pred_check_branch
        %623 = sbr.rel (%p621) target = $region56
      $region55: #{tpu_custom_call.1} parent=5 // pred_region
        %s624 = ssub.s32 %s19, 2
        // Predicated region
        $region57: #{tpu_custom_call.1} parent=55 // pred_check
          %p625 = pneg %p162
        $region58: #{tpu_custom_call.1} parent=55 // pred_check_branch
          %627 = sbr.rel (%p625) target = $region60
        $region59: #{tpu_custom_call.1} parent=55 // pred_region
          %s628 = sand.u32 %s147, 1
          %s629 = scalar_lea.sflag [#allocation4], %s628
          %s630 = sand.u32 %s147, 1
          %s631 = smul.addr %s630, 16
          %s632 = scalar_lea.vmem [#allocation8], %s631
          %634 = dma.done %s629, 256
        $region60: #{tpu_custom_call.1} parent=55 // pred_fallthru
          _
      $region56: #{tpu_custom_call.1} parent=5 // pred_fallthru
        _
    $region6: #{tpu_custom_call.1} parent=1 // loop_footer
      %s23 = sadd.s32 1, %s19
    $region7: #{tpu_custom_call.1} parent=1 // loop_footer_branch
      %18 = sbr.rel target = $region3
    $region8: #{tpu_custom_call.1} parent=1 // loop_exit
      _
    %635 = vsyncpa [#allocation3], 1
    %s636 = scalar_lea.sflag [#allocation3], 1
    %637 = vsyncpa %s636, 1
    %638 = vsyncpa [#allocation6], 1
    %s639 = scalar_lea.sflag [#allocation6], 1
    %640 = vsyncpa %s639, 1
    %641 = vsyncpa [#allocation4], 1
    %s642 = scalar_lea.sflag [#allocation4], 1
    %643 = vsyncpa %s642, 1

</llo_original>
